<compile_context>
chip_gen: v6e
topology: v6e:2x2x1
jax: 0.10.0
libtpu: 0.0.40
codegen_flags: <defaults>
</compile_context>

<pallas_src>
import functools

import jax
import jax.numpy as jnp
from jax.experimental import pallas as pl
from jax.experimental.pallas import tpu as pltpu


def actor_kernel(x_ref, w1_ref, b1_ref, w2_ref, b2_ref, w3_ref, b3_ref, out_ref):
    w_dtype = w1_ref.dtype              # matmul input dtype (f32 or bf16)
    x = x_ref[...].astype(w_dtype)      # in-kernel cast: hidden under DMA

    # Layer 1: Linear(state_dim, 64) + Tanh   (f32 accumulate / f32 elementwise)
    h1 = jnp.tanh(
        jnp.dot(x, w1_ref[...], preferred_element_type=jnp.float32) + b1_ref[...])

    # Layer 2: Linear(64, 64) + Tanh
    h2 = jnp.tanh(
        jnp.dot(h1.astype(w_dtype), w2_ref[...],
                preferred_element_type=jnp.float32) + b2_ref[...])

    # Layer 3: Linear(64, action_dim) -- true width, no lane padding needed.
    logits = jnp.dot(h2.astype(w_dtype), w3_ref[...],
                     preferred_element_type=jnp.float32) + b3_ref[...]

    # Numerically-stable softmax over the last axis.
    m = jnp.max(logits, axis=-1, keepdims=True)
    e = jnp.exp(logits - m)
    s = jnp.sum(e, axis=-1, keepdims=True)
    # EUP approx reciprocal + one Newton step -> f32-exact, still free (mem-bound).
    inv = pl.reciprocal(s, approx=True)
    inv = inv * (2.0 - s * inv)
    out_ref[...] = (e * inv).astype(out_ref.dtype)


def _round_up(x, m):
    return ((x + m - 1) // m) * m


def prepare_params(w1, b1, w2, b2, w3, b3, matmul_dtype=jnp.float32):
    """One-time parameter prep (outside the hot path): cast matmul inputs to the
    requested dtype, keep biases in f32, make biases 2-D for in-kernel broadcast."""
    return (
        w1.astype(matmul_dtype), b1.reshape(1, -1).astype(jnp.float32),
        w2.astype(matmul_dtype), b2.reshape(1, -1).astype(jnp.float32),
        w3.astype(matmul_dtype), b3.reshape(1, -1).astype(jnp.float32),
    )


@functools.partial(jax.jit, static_argnames=("tile_b",))
def actor_forward(state, params, *, tile_b=4096):
    """state: (B, state_dim) f32 -> (B, action_dim) f32 action probabilities."""
    w1, b1, w2, b2, w3, b3 = params
    B, state_dim = state.shape
    action_dim = w3.shape[1]

    # Sublane multiple: 8 for f32, 16 for bf16-packed matmul inputs.
    sub = 16 if w1.dtype == jnp.bfloat16 else 8

    # Large tile to amortize per-step overhead, but capped so the grid has >= 2
    # steps whenever the batch allows it (v7x megacore utilization).
    tile_b = max(_round_up(int(tile_b), sub), sub)
    half_b = _round_up(pl.cdiv(B, 2), sub)
    tile_b_eff = min(tile_b, half_b)

    grid = (pl.cdiv(B, tile_b_eff),)    # no jnp.pad: last block is partial/masked

    row_in_spec = pl.BlockSpec((tile_b_eff, state_dim), lambda i: (i, 0))
    row_out_spec = pl.BlockSpec((tile_b_eff, action_dim), lambda i: (i, 0))
    const_spec = lambda shape: pl.BlockSpec(shape, lambda i: (0, 0))

    return pl.pallas_call(
        actor_kernel,
        out_shape=jax.ShapeDtypeStruct((B, action_dim), jnp.float32),
        grid=grid,
        in_specs=[
            row_in_spec,
            const_spec(w1.shape), const_spec(b1.shape),
            const_spec(w2.shape), const_spec(b2.shape),
            const_spec(w3.shape), const_spec(b3.shape),
        ],
        out_specs=row_out_spec,
        compiler_params=pltpu.CompilerParams(
            dimension_semantics=("parallel",)),   # megacore sharding on v7x
    )(state, w1, b1, w2, b2, w3, b3)


def init_params(key, state_dim, action_dim, hidden=64):
    """Deterministic synthetic parameters (PyTorch Linear weights, stored (in, out))."""
    ks = jax.random.split(key, 6)
    scale = 0.1
    w1 = scale * jax.random.normal(ks[0], (state_dim, hidden), jnp.float32)
    b1 = scale * jax.random.normal(ks[1], (hidden,), jnp.float32)
    w2 = scale * jax.random.normal(ks[2], (hidden, hidden), jnp.float32)
    b2 = scale * jax.random.normal(ks[3], (hidden,), jnp.float32)
    w3 = scale * jax.random.normal(ks[4], (hidden, action_dim), jnp.float32)
    b3 = scale * jax.random.normal(ks[5], (action_dim,), jnp.float32)
    return w1, b1, w2, b2, w3, b3


def reference_forward(state, w1, b1, w2, b2, w3, b3):
    h1 = jnp.tanh(state @ w1 + b1)
    h2 = jnp.tanh(h1 @ w2 + b2)
    logits = h2 @ w3 + b3
    return jax.nn.softmax(logits, axis=-1)


if __name__ == "__main__":
    key = jax.random.PRNGKey(0)
    k_x, k_p, k_x2 = jax.random.split(key, 3)

    batch = 8
    state_dim = 16
    action_dim = 6

    state = jax.random.normal(k_x, (batch, state_dim), jnp.float32)
    raw_params = init_params(k_p, state_dim, action_dim)
    ref = reference_forward(state, *raw_params)

    # --- f32 matmul path ---
    params_f32 = prepare_params(*raw_params, matmul_dtype=jnp.float32)
    probs = jax.block_until_ready(actor_forward(state, params_f32))
    assert probs.shape == (batch, action_dim)
    assert jnp.allclose(probs, ref, atol=2e-3, rtol=2e-3)
    assert jnp.allclose(jnp.sum(probs, axis=-1), 1.0, atol=1e-4)

    # --- bf16 matmul-input path (MXU-native on v5e/v6e/v7x; f32 accumulate) ---
    params_bf16 = prepare_params(*raw_params, matmul_dtype=jnp.bfloat16)
    probs_bf16 = jax.block_until_ready(actor_forward(state, params_bf16))
    assert probs_bf16.shape == (batch, action_dim)
    assert jnp.allclose(probs_bf16, ref, atol=2e-2, rtol=2e-2)

    # --- multi-step grid with a partial (masked) final block: B=37, tile_b=8 ---
    batch2 = 37
    state2 = jax.random.normal(k_x2, (batch2, state_dim), jnp.float32)
    ref2 = reference_forward(state2, *raw_params)
    probs2 = jax.block_until_ready(actor_forward(state2, params_f32, tile_b=8))
    assert probs2.shape == (batch2, action_dim)
    assert jnp.allclose(probs2, ref2, atol=2e-3, rtol=2e-3)

    # --- default large tile with non-divisible batch (grid capped to >=2 steps) ---
    probs3 = jax.block_until_ready(actor_forward(state2, params_f32))
    assert probs3.shape == (batch2, action_dim)
    assert jnp.allclose(probs3, ref2, atol=2e-3, rtol=2e-3)

    print("KERNEL_OK")
</pallas_src>

<mosaic_0001>
module attributes {stable_mosaic.version = 11 : i64} {
  func.func @actor_kernel(%arg0: i32, %arg1: memref<8x16xf32, #tpu.memory_space<vmem>>, %arg2: memref<16x64xf32, #tpu.memory_space<vmem>>, %arg3: memref<1x64xf32, #tpu.memory_space<vmem>>, %arg4: memref<64x64xf32, #tpu.memory_space<vmem>>, %arg5: memref<1x64xf32, #tpu.memory_space<vmem>>, %arg6: memref<64x6xf32, #tpu.memory_space<vmem>>, %arg7: memref<1x6xf32, #tpu.memory_space<vmem>>, %arg8: memref<8x6xf32, #tpu.memory_space<vmem>>) attributes {dimension_semantics = [#tpu.dimension_semantics<parallel>], iteration_bounds = array<i64: 1>, scalar_prefetch = 0 : i64, scratch_operands = 0 : i64, tpu.core_type = #tpu.core_type<tc>, window_params = [{transform_indices = @transform_0, window_bounds = array<i64: 8, 16>}, {pipeline_mode = #tpu.pipeline_mode<synchronous>, transform_indices = @transform_1, window_bounds = array<i64: 16, 64>}, {pipeline_mode = #tpu.pipeline_mode<synchronous>, transform_indices = @transform_2, window_bounds = array<i64: 1, 64>}, {pipeline_mode = #tpu.pipeline_mode<synchronous>, transform_indices = @transform_3, window_bounds = array<i64: 64, 64>}, {pipeline_mode = #tpu.pipeline_mode<synchronous>, transform_indices = @transform_4, window_bounds = array<i64: 1, 64>}, {pipeline_mode = #tpu.pipeline_mode<synchronous>, transform_indices = @transform_5, window_bounds = array<i64: 64, 6>}, {pipeline_mode = #tpu.pipeline_mode<synchronous>, transform_indices = @transform_6, window_bounds = array<i64: 1, 6>}, {transform_indices = @transform_7, window_bounds = array<i64: 8, 6>}]} {
    %c0 = arith.constant 0 : index
    %c0_0 = arith.constant 0 : index
    %0 = vector.load %arg1[%c0, %c0_0] : memref<8x16xf32, #tpu.memory_space<vmem>>, vector<8x16xf32>
    %c0_1 = arith.constant 0 : index
    %c0_2 = arith.constant 0 : index
    %1 = vector.load %arg2[%c0_1, %c0_2] : memref<16x64xf32, #tpu.memory_space<vmem>>, vector<16x64xf32>
    %cst = arith.constant dense<0.000000e+00> : vector<8x64xf32>
    %2 = tpu.matmul %0, %1, %cst {dimension_numbers = #tpu.dot_dimension_numbers<[1], [0], [0], [1], [0, 0, 1, 1], [], []>} : vector<8x16xf32>, vector<16x64xf32>, vector<8x64xf32> -> vector<8x64xf32>
    %c0_3 = arith.constant 0 : index
    %c0_4 = arith.constant 0 : index
    %3 = vector.load %arg3[%c0_3, %c0_4] : memref<1x64xf32, #tpu.memory_space<vmem>>, vector<1x64xf32>
    %4 = vector.broadcast %3 : vector<1x64xf32> to vector<8x64xf32>
    %5 = arith.addf %2, %4 : vector<8x64xf32>
    %6 = math.tanh %5 : vector<8x64xf32>
    %c0_5 = arith.constant 0 : index
    %c0_6 = arith.constant 0 : index
    %7 = vector.load %arg4[%c0_5, %c0_6] : memref<64x64xf32, #tpu.memory_space<vmem>>, vector<64x64xf32>
    %cst_7 = arith.constant dense<0.000000e+00> : vector<8x64xf32>
    %8 = tpu.matmul %6, %7, %cst_7 {dimension_numbers = #tpu.dot_dimension_numbers<[1], [0], [0], [1], [0, 0, 1, 1], [], []>} : vector<8x64xf32>, vector<64x64xf32>, vector<8x64xf32> -> vector<8x64xf32>
    %c0_8 = arith.constant 0 : index
    %c0_9 = arith.constant 0 : index
    %9 = vector.load %arg5[%c0_8, %c0_9] : memref<1x64xf32, #tpu.memory_space<vmem>>, vector<1x64xf32>
    %10 = vector.broadcast %9 : vector<1x64xf32> to vector<8x64xf32>
    %11 = arith.addf %8, %10 : vector<8x64xf32>
    %12 = math.tanh %11 : vector<8x64xf32>
    %c0_10 = arith.constant 0 : index
    %c0_11 = arith.constant 0 : index
    %13 = vector.load %arg6[%c0_10, %c0_11] : memref<64x6xf32, #tpu.memory_space<vmem>>, vector<64x6xf32>
    %cst_12 = arith.constant dense<0.000000e+00> : vector<8x6xf32>
    %14 = tpu.matmul %12, %13, %cst_12 {dimension_numbers = #tpu.dot_dimension_numbers<[1], [0], [0], [1], [0, 0, 1, 1], [], []>} : vector<8x64xf32>, vector<64x6xf32>, vector<8x6xf32> -> vector<8x6xf32>
    %c0_13 = arith.constant 0 : index
    %c0_14 = arith.constant 0 : index
    %15 = vector.load %arg7[%c0_13, %c0_14] : memref<1x6xf32, #tpu.memory_space<vmem>>, vector<1x6xf32>
    %16 = vector.broadcast %15 : vector<1x6xf32> to vector<8x6xf32>
    %17 = arith.addf %14, %16 : vector<8x6xf32>
    %cst_15 = arith.constant dense<0xFF800000> : vector<8xf32>
    %18 = vector.multi_reduction <maximumf>, %17, %cst_15 [1] : vector<8x6xf32> to vector<8xf32>
    %19 = vector.shape_cast %18 : vector<8xf32> to vector<8x1xf32>
    %20 = vector.broadcast %19 : vector<8x1xf32> to vector<8x6xf32>
    %21 = arith.subf %17, %20 : vector<8x6xf32>
    %22 = math.exp %21 : vector<8x6xf32>
    %cst_16 = arith.constant dense<0.000000e+00> : vector<8xf32>
    %23 = vector.multi_reduction <add>, %22, %cst_16 [1] : vector<8x6xf32> to vector<8xf32>
    %24 = vector.shape_cast %23 : vector<8xf32> to vector<8x1xf32>
    %25 = tpu.reciprocal %24 {approx = true} : vector<8x1xf32> -> vector<8x1xf32>
    %26 = arith.mulf %24, %25 : vector<8x1xf32>
    %cst_17 = arith.constant 2.000000e+00 : f32
    %27 = vector.broadcast %cst_17 : f32 to vector<8x1xf32>
    %28 = arith.subf %27, %26 : vector<8x1xf32>
    %29 = arith.mulf %25, %28 : vector<8x1xf32>
    %30 = vector.broadcast %29 : vector<8x1xf32> to vector<8x6xf32>
    %31 = arith.mulf %22, %30 : vector<8x6xf32>
    %c0_18 = arith.constant 0 : index
    %c0_19 = arith.constant 0 : index
    %32 = vector.load %arg8[%c0_18, %c0_19] : memref<8x6xf32, #tpu.memory_space<vmem>>, vector<8x6xf32>
    tpu.vector_store %arg8[%c0_18, %c0_19], %31 {strides = array<i32>} : memref<8x6xf32, #tpu.memory_space<vmem>>, vector<8x6xf32>,
    return
  }
  func.func @transform_0(%arg0: i32) -> (i32, i32) {
    %c0_i32 = arith.constant 0 : i32
    %c0_i32_0 = arith.constant 0 : i32
    return %arg0, %c0_i32 : i32, i32
  }
  func.func @transform_1(%arg0: i32) -> (i32, i32) {
    %c0_i32 = arith.constant 0 : i32
    %c0_i32_0 = arith.constant 0 : i32
    %c0_i32_1 = arith.constant 0 : i32
    return %c0_i32, %c0_i32_0 : i32, i32
  }
  func.func @transform_2(%arg0: i32) -> (i32, i32) {
    %c0_i32 = arith.constant 0 : i32
    %c0_i32_0 = arith.constant 0 : i32
    %c0_i32_1 = arith.constant 0 : i32
    return %c0_i32, %c0_i32_0 : i32, i32
  }
  func.func @transform_3(%arg0: i32) -> (i32, i32) {
    %c0_i32 = arith.constant 0 : i32
    %c0_i32_0 = arith.constant 0 : i32
    %c0_i32_1 = arith.constant 0 : i32
    return %c0_i32, %c0_i32_0 : i32, i32
  }
  func.func @transform_4(%arg0: i32) -> (i32, i32) {
    %c0_i32 = arith.constant 0 : i32
    %c0_i32_0 = arith.constant 0 : i32
    %c0_i32_1 = arith.constant 0 : i32
    return %c0_i32, %c0_i32_0 : i32, i32
  }
  func.func @transform_5(%arg0: i32) -> (i32, i32) {
    %c0_i32 = arith.constant 0 : i32
    %c0_i32_0 = arith.constant 0 : i32
    %c0_i32_1 = arith.constant 0 : i32
    return %c0_i32, %c0_i32_0 : i32, i32
  }
  func.func @transform_6(%arg0: i32) -> (i32, i32) {
    %c0_i32 = arith.constant 0 : i32
    %c0_i32_0 = arith.constant 0 : i32
    %c0_i32_1 = arith.constant 0 : i32
    return %c0_i32, %c0_i32_0 : i32, i32
  }
  func.func @transform_7(%arg0: i32) -> (i32, i32) {
    %c0_i32 = arith.constant 0 : i32
    %c0_i32_0 = arith.constant 0 : i32
    return %arg0, %c0_i32 : i32, i32
  }
}

</mosaic_0001>

<llo_original>
// kernel: actor_forward.1
$region0: #{actor_forward.1}
  #allocation0 [shape = 'u32[]', space=smem, size = 0x4, offset = 0x4, fixed_abs, tag = 'smem constant byte address 0x4 - core index']
  #allocation1 [shape = 'u32[144,128]{1,0:T(1,128)}', space=vmem, size = 0x12000, scoped, tag = 'internal scratch']
  %s0 = inlined_call_operand.vmem [shape: f32[8,16], index: 0, kind: input, shape index: {}]
  %s1 = inlined_call_operand.hbm [shape: f32[16,64], index: 1, kind: input, shape index: {}]
  %s2 = inlined_call_operand.vmem [shape: f32[1,64], index: 2, kind: input, shape index: {}]
  %s3 = inlined_call_operand.vmem [shape: f32[64,64], index: 3, kind: input, shape index: {}]
  %s4 = inlined_call_operand.hbm [shape: f32[1,64], index: 4, kind: input, shape index: {}]
  %s5 = inlined_call_operand.vmem [shape: f32[64,6], index: 5, kind: input, shape index: {}]
  %s6 = inlined_call_operand.vmem [shape: f32[1,6], index: 6, kind: input, shape index: {}]
  %s7 = inlined_call_operand.hbm [shape: f32[8,6], index: 7, kind: output, shape index: {}]
  %s8 = sld [smem:[#allocation0]]
  $region46: #{actor_forward.1} parent=0
    _
  %s10 = ssub.s32 1, %s8
  %s11 = scalar_select 0, %s10, %s8
  $region1: #{actor_forward.1} parent=0
    #allocation2 [shape = 'u8[8192]{0}', space=vmem, size = 0x2000, scoped, tag = 'input window, operand 1, single buffered']
    #allocation3 [shape = 's32[1]{0}', space=sflag, size = 0x4, scoped, tag = 'scoped memory for actor_forward.1']
    #allocation4 [shape = 's32[1]{0}', space=sflag, size = 0x4, scoped, tag = 'scoped memory for actor_forward.1']
    #allocation5 [shape = 'u8[512]{0}', space=vmem, size = 0x400, scoped, tag = 'input window, operand 4, single buffered']
    #allocation6 [shape = 's32[1]{0}', space=sflag, size = 0x4, scoped, tag = 'scoped memory for actor_forward.1']
    #allocation7 [shape = 'u8[4096]{0}', space=vmem, size = 0x1000, scoped, tag = 'output window, operand 0, single buffered']
    %12 = vsyncpa [#allocation3], 0
    %13 = vsyncpa [#allocation6], 0
    %14 = vsyncpa [#allocation4], 0
    // Predicated region
    $region2: #{actor_forward.1} parent=1 // pred_check
      _
    $region3: #{actor_forward.1} parent=1 // pred_check_branch
      %16 = sbr.rel (0) target = $region5
    $region4: #{actor_forward.1} parent=1 // pred_region
      _
    $region5: #{actor_forward.1} parent=1 // pred_fallthru
      _
    // Predicated region
    $region6: #{actor_forward.1} parent=1 // pred_check
      _
    $region7: #{actor_forward.1} parent=1 // pred_check_branch
      %18 = sbr.rel (0) target = $region9
    $region8: #{actor_forward.1} parent=1 // pred_region
      %s20 = ssub.s32 256, 256
      %21 = vsyncadd [#allocation3], %s20
      %s22 = sshll.u32 [#allocation2], 4
      %s23 = int_to_ptr.vmem [resolvable:$true] %s22
      %28 = dma.hbm_to_vmem [thread:$0]  %s1, 256, %s23, [#allocation3], 128, 128, 8
    $region9: #{actor_forward.1} parent=1 // pred_fallthru
      _
    // Predicated region
    $region10: #{actor_forward.1} parent=1 // pred_check
      _
    $region11: #{actor_forward.1} parent=1 // pred_check_branch
      %30 = sbr.rel (0) target = $region13
    $region12: #{actor_forward.1} parent=1 // pred_region
      _
    $region13: #{actor_forward.1} parent=1 // pred_fallthru
      _
    // Predicated region
    $region14: #{actor_forward.1} parent=1 // pred_check
      _
    $region15: #{actor_forward.1} parent=1 // pred_check_branch
      %32 = sbr.rel (0) target = $region17
    $region16: #{actor_forward.1} parent=1 // pred_region
      _
    $region17: #{actor_forward.1} parent=1 // pred_fallthru
      _
    // Predicated region
    $region18: #{actor_forward.1} parent=1 // pred_check
      _
    $region19: #{actor_forward.1} parent=1 // pred_check_branch
      %34 = sbr.rel (0) target = $region21
    $region20: #{actor_forward.1} parent=1 // pred_region
      %s36 = ssub.s32 16, 16
      %37 = vsyncadd [#allocation6], %s36
      %s39 = sshll.u32 [#allocation5], 4
      %s40 = int_to_ptr.vmem [resolvable:$true] %s39
      %42 = dma.hbm_to_vmem [thread:$0]  %s4, 16, %s40, [#allocation6]
    $region21: #{actor_forward.1} parent=1 // pred_fallthru
      _
    // Predicated region
    $region22: #{actor_forward.1} parent=1 // pred_check
      _
    $region23: #{actor_forward.1} parent=1 // pred_check_branch
      %44 = sbr.rel (0) target = $region25
    $region24: #{actor_forward.1} parent=1 // pred_region
      _
    $region25: #{actor_forward.1} parent=1 // pred_fallthru
      _
    // Predicated region
    $region26: #{actor_forward.1} parent=1 // pred_check
      _
    $region27: #{actor_forward.1} parent=1 // pred_check_branch
      %46 = sbr.rel (0) target = $region29
    $region28: #{actor_forward.1} parent=1 // pred_region
      _
    $region29: #{actor_forward.1} parent=1 // pred_fallthru
      _
    // Predicated region
    $region30: #{actor_forward.1} parent=1 // pred_check
      _
    $region31: #{actor_forward.1} parent=1 // pred_check_branch
      %48 = sbr.rel (0) target = $region33
    $region32: #{actor_forward.1} parent=1 // pred_region
      %49 = dma.done [#allocation3], 256
    $region33: #{actor_forward.1} parent=1 // pred_fallthru
      _
    // Predicated region
    $region34: #{actor_forward.1} parent=1 // pred_check
      _
    $region35: #{actor_forward.1} parent=1 // pred_check_branch
      %51 = sbr.rel (0) target = $region37
    $region36: #{actor_forward.1} parent=1 // pred_region
      %52 = dma.done [#allocation6], 16
    $region37: #{actor_forward.1} parent=1 // pred_fallthru
      _
    %v53 = vld [vmem:[%s0] sm:$0xff]
    %v54 = vld [vmem:[#allocation2] sm:$0xff]
    %v55 = vld [vmem:[#allocation2 + $0x8] sm:$0xff]
    %v56 = vld [vmem:[%s2] sm:$0x1]
    %v58 = vlaneseq
    %v59 = vshrl.u32 %v58, 7
    %v60 = vsub.s32 0, %v59
    %v61 = vrot.slane %v56, %v60
    %vm63 = vcmask 130048
    %v65 = vsel %vm63, %v53, 0
    %67 = vmatprep.subr.mxu0 0.0
    %68 = vmatpush1.msra.mxu0 0.0
    %69 = vmatprep.subr.mxu0 0.0
    %70 = vmatpush1.msra.mxu0 0.0
    %71 = vmatprep.subr.mxu0 0.0
    %72 = vmatpush1.msra.mxu0 0.0
    %73 = vmatprep.subr.mxu0 0.0
    %74 = vmatpush1.msra.mxu0 0.0
    %75 = vmatprep.subr.mxu0 0.0
    %76 = vmatpush1.msra.mxu0 0.0
    %77 = vmatprep.subr.mxu0 0.0
    %78 = vmatpush1.msra.mxu0 0.0
    %79 = vmatprep.subr.mxu0 0.0
    %80 = vmatpush1.msra.mxu0 0.0
    %81 = vmatprep.subr.mxu0 0.0
    %82 = vmatpush1.msra.mxu0 0.0
    %83 = vmatprep.subr.mxu0 0.0
    %84 = vmatpush1.msra.mxu0 0.0
    %85 = vmatprep.subr.mxu0 0.0
    %86 = vmatpush1.msra.mxu0 0.0
    %87 = vmatprep.subr.mxu0 0.0
    %88 = vmatpush1.msra.mxu0 0.0
    %89 = vmatprep.subr.mxu0 0.0
    %90 = vmatpush1.msra.mxu0 0.0
    %91 = vmatprep.subr.mxu0 0.0
    %92 = vmatpush1.msra.mxu0 0.0
    %93 = vmatprep.subr.mxu0 0.0
    %94 = vmatpush1.msra.mxu0 0.0
    %95 = vmatprep.subr.mxu0 0.0
    %96 = vmatpush1.msra.mxu0 %v55
    %97 = vmatprep.subr.mxu0 0.0
    %98 = vmatpush1.msra.mxu0 %v54
    %99 = vmatprep.subr.mxu0 0.0
    %100 = vmatpush2.msra.mxu0 0.0
    %101 = vmatprep.subr.mxu0 0.0
    %102 = vmatpush2.msra.mxu0 0.0
    %103 = vmatprep.subr.mxu0 0.0
    %104 = vmatpush2.msra.mxu0 0.0
    %105 = vmatprep.subr.mxu0 0.0
    %106 = vmatpush2.msra.mxu0 0.0
    %107 = vmatprep.subr.mxu0 0.0
    %108 = vmatpush2.msra.mxu0 0.0
    %109 = vmatprep.subr.mxu0 0.0
    %110 = vmatpush2.msra.mxu0 0.0
    %111 = vmatprep.subr.mxu0 0.0
    %112 = vmatpush2.msra.mxu0 0.0
    %113 = vmatprep.subr.mxu0 0.0
    %114 = vmatpush2.msra.mxu0 0.0
    %115 = vmatprep.subr.mxu0 0.0
    %116 = vmatpush2.msra.mxu0 0.0
    %117 = vmatprep.subr.mxu0 0.0
    %118 = vmatpush2.msra.mxu0 0.0
    %119 = vmatprep.subr.mxu0 0.0
    %120 = vmatpush2.msra.mxu0 0.0
    %121 = vmatprep.subr.mxu0 0.0
    %122 = vmatpush2.msra.mxu0 0.0
    %123 = vmatprep.subr.mxu0 0.0
    %124 = vmatpush2.msra.mxu0 0.0
    %125 = vmatprep.subr.mxu0 0.0
    %126 = vmatpush2.msra.mxu0 0.0
    %127 = vmatprep.subr.mxu0 0.0
    %128 = vmatpush2.msra.mxu0 0.0
    %129 = vmatprep.subr.mxu0 0.0
    %130 = vmatpush2.msra.mxu0 0.0
    %131 = vmatprep.mubr.f32.mxu0 0.0
    %132 = vmatmul.mubr.f32.gmra.mxu0 %v65
    %v133 = vpop.f32.mrf.mxu0
    %v134 = vadd.f32 %v61, %v133
    %v135 = vpop.f32.mrf.mxu0
    %136 = vdwg.mxu0
    %v137 = vtanh.pop %v134
    %v138 = vld [vmem:[%s3] sm:$0xff]
    %v139 = vld [vmem:[%s3 + $0x8] sm:$0xff]
    %v140 = vld [vmem:[%s3 + $0x10] sm:$0xff]
    %v141 = vld [vmem:[%s3 + $0x18] sm:$0xff]
    %v142 = vld [vmem:[%s3 + $0x20] sm:$0xff]
    %v143 = vld [vmem:[%s3 + $0x28] sm:$0xff]
    %v144 = vld [vmem:[%s3 + $0x30] sm:$0xff]
    %v145 = vld [vmem:[%s3 + $0x38] sm:$0xff]
    %v146 = vld [vmem:[#allocation5] sm:$0x1]
    %v148 = vlaneseq
    %v149 = vshrl.u32 %v148, 7
    %v150 = vsub.s32 0, %v149
    %v151 = vrot.slane %v146, %v150
    %vm153 = vcmask 523264
    %v155 = vsel %vm153, %v137, 0
    %157 = vmatprep.subr.mxu0 0.0
    %158 = vmatpush1.msra.mxu0 0.0
    %159 = vmatprep.subr.mxu0 0.0
    %160 = vmatpush1.msra.mxu0 0.0
    %161 = vmatprep.subr.mxu0 0.0
    %162 = vmatpush1.msra.mxu0 0.0
    %163 = vmatprep.subr.mxu0 0.0
    %164 = vmatpush1.msra.mxu0 0.0
    %165 = vmatprep.subr.mxu0 0.0
    %166 = vmatpush1.msra.mxu0 0.0
    %167 = vmatprep.subr.mxu0 0.0
    %168 = vmatpush1.msra.mxu0 0.0
    %169 = vmatprep.subr.mxu0 0.0
    %170 = vmatpush1.msra.mxu0 0.0
    %171 = vmatprep.subr.mxu0 0.0
    %172 = vmatpush1.msra.mxu0 0.0
    %173 = vmatprep.subr.mxu0 0.0
    %174 = vmatpush1.msra.mxu0 %v145
    %175 = vmatprep.subr.mxu0 0.0
    %176 = vmatpush1.msra.mxu0 %v144
    %177 = vmatprep.subr.mxu0 0.0
    %178 = vmatpush1.msra.mxu0 %v143
    %179 = vmatprep.subr.mxu0 0.0
    %180 = vmatpush1.msra.mxu0 %v142
    %181 = vmatprep.subr.mxu0 0.0
    %182 = vmatpush1.msra.mxu0 %v141
    %183 = vmatprep.subr.mxu0 0.0
    %184 = vmatpush1.msra.mxu0 %v140
    %185 = vmatprep.subr.mxu0 0.0
    %186 = vmatpush1.msra.mxu0 %v139
    %187 = vmatprep.subr.mxu0 0.0
    %188 = vmatpush1.msra.mxu0 %v138
    %189 = vmatprep.subr.mxu0 0.0
    %190 = vmatpush2.msra.mxu0 0.0
    %191 = vmatprep.subr.mxu0 0.0
    %192 = vmatpush2.msra.mxu0 0.0
    %193 = vmatprep.subr.mxu0 0.0
    %194 = vmatpush2.msra.mxu0 0.0
    %195 = vmatprep.subr.mxu0 0.0
    %196 = vmatpush2.msra.mxu0 0.0
    %197 = vmatprep.subr.mxu0 0.0
    %198 = vmatpush2.msra.mxu0 0.0
    %199 = vmatprep.subr.mxu0 0.0
    %200 = vmatpush2.msra.mxu0 0.0
    %201 = vmatprep.subr.mxu0 0.0
    %202 = vmatpush2.msra.mxu0 0.0
    %203 = vmatprep.subr.mxu0 0.0
    %204 = vmatpush2.msra.mxu0 0.0
    %205 = vmatprep.subr.mxu0 0.0
    %206 = vmatpush2.msra.mxu0 0.0
    %207 = vmatprep.subr.mxu0 0.0
    %208 = vmatpush2.msra.mxu0 0.0
    %209 = vmatprep.subr.mxu0 0.0
    %210 = vmatpush2.msra.mxu0 0.0
    %211 = vmatprep.subr.mxu0 0.0
    %212 = vmatpush2.msra.mxu0 0.0
    %213 = vmatprep.subr.mxu0 0.0
    %214 = vmatpush2.msra.mxu0 0.0
    %215 = vmatprep.subr.mxu0 0.0
    %216 = vmatpush2.msra.mxu0 0.0
    %217 = vmatprep.subr.mxu0 0.0
    %218 = vmatpush2.msra.mxu0 0.0
    %219 = vmatprep.subr.mxu0 0.0
    %220 = vmatpush2.msra.mxu0 0.0
    %221 = vmatprep.mubr.f32.mxu0 0.0
    %222 = vmatmul.mubr.f32.gmra.mxu0 %v155
    %v223 = vpop.f32.mrf.mxu0
    %v224 = vadd.f32 %v151, %v223
    %v225 = vpop.f32.mrf.mxu0
    %226 = vdwg.mxu0
    %v227 = vtanh.pop %v224
    %v228 = vld [vmem:[%s5] sm:$0xff]
    %v229 = vld [vmem:[%s5 + $0x8] sm:$0xff]
    %v230 = vld [vmem:[%s5 + $0x10] sm:$0xff]
    %v231 = vld [vmem:[%s5 + $0x18] sm:$0xff]
    %v232 = vld [vmem:[%s5 + $0x20] sm:$0xff]
    %v233 = vld [vmem:[%s5 + $0x28] sm:$0xff]
    %v234 = vld [vmem:[%s5 + $0x30] sm:$0xff]
    %v235 = vld [vmem:[%s5 + $0x38] sm:$0xff]
    %v236 = vld [vmem:[%s6] sm:$0x1]
    %v238 = vlaneseq
    %v239 = vshrl.u32 %v238, 7
    %v240 = vsub.s32 0, %v239
    %v241 = vrot.slane %v236, %v240
    %v244 = vsel %vm153, %v227, 0
    %246 = vmatprep.subr.mxu0 0.0
    %247 = vmatpush1.msra.mxu0 0.0
    %248 = vmatprep.subr.mxu0 0.0
    %249 = vmatpush1.msra.mxu0 0.0
    %250 = vmatprep.subr.mxu0 0.0
    %251 = vmatpush1.msra.mxu0 0.0
    %252 = vmatprep.subr.mxu0 0.0
    %253 = vmatpush1.msra.mxu0 0.0
    %254 = vmatprep.subr.mxu0 0.0
    %255 = vmatpush1.msra.mxu0 0.0
    %256 = vmatprep.subr.mxu0 0.0
    %257 = vmatpush1.msra.mxu0 0.0
    %258 = vmatprep.subr.mxu0 0.0
    %259 = vmatpush1.msra.mxu0 0.0
    %260 = vmatprep.subr.mxu0 0.0
    %261 = vmatpush1.msra.mxu0 0.0
    %262 = vmatprep.subr.mxu0 0.0
    %263 = vmatpush1.msra.mxu0 %v235
    %264 = vmatprep.subr.mxu0 0.0
    %265 = vmatpush1.msra.mxu0 %v234
    %266 = vmatprep.subr.mxu0 0.0
    %267 = vmatpush1.msra.mxu0 %v233
    %268 = vmatprep.subr.mxu0 0.0
    %269 = vmatpush1.msra.mxu0 %v232
    %270 = vmatprep.subr.mxu0 0.0
    %271 = vmatpush1.msra.mxu0 %v231
    %272 = vmatprep.subr.mxu0 0.0
    %273 = vmatpush1.msra.mxu0 %v230
    %274 = vmatprep.subr.mxu0 0.0
    %275 = vmatpush1.msra.mxu0 %v229
    %276 = vmatprep.subr.mxu0 0.0
    %277 = vmatpush1.msra.mxu0 %v228
    %278 = vmatprep.subr.mxu0 0.0
    %279 = vmatpush2.msra.mxu0 0.0
    %280 = vmatprep.subr.mxu0 0.0
    %281 = vmatpush2.msra.mxu0 0.0
    %282 = vmatprep.subr.mxu0 0.0
    %283 = vmatpush2.msra.mxu0 0.0
    %284 = vmatprep.subr.mxu0 0.0
    %285 = vmatpush2.msra.mxu0 0.0
    %286 = vmatprep.subr.mxu0 0.0
    %287 = vmatpush2.msra.mxu0 0.0
    %288 = vmatprep.subr.mxu0 0.0
    %289 = vmatpush2.msra.mxu0 0.0
    %290 = vmatprep.subr.mxu0 0.0
    %291 = vmatpush2.msra.mxu0 0.0
    %292 = vmatprep.subr.mxu0 0.0
    %293 = vmatpush2.msra.mxu0 0.0
    %294 = vmatprep.subr.mxu0 0.0
    %295 = vmatpush2.msra.mxu0 0.0
    %296 = vmatprep.subr.mxu0 0.0
    %297 = vmatpush2.msra.mxu0 0.0
    %298 = vmatprep.subr.mxu0 0.0
    %299 = vmatpush2.msra.mxu0 0.0
    %300 = vmatprep.subr.mxu0 0.0
    %301 = vmatpush2.msra.mxu0 0.0
    %302 = vmatprep.subr.mxu0 0.0
    %303 = vmatpush2.msra.mxu0 0.0
    %304 = vmatprep.subr.mxu0 0.0
    %305 = vmatpush2.msra.mxu0 0.0
    %306 = vmatprep.subr.mxu0 0.0
    %307 = vmatpush2.msra.mxu0 0.0
    %308 = vmatprep.subr.mxu0 0.0
    %309 = vmatpush2.msra.mxu0 0.0
    %310 = vmatprep.mubr.f32.mxu0 0.0
    %311 = vmatmul.mubr.f32.gmra.mxu0 %v244
    %v312 = vpop.f32.mrf.mxu0
    %v313 = vadd.f32 %v241, %v312
    %v314 = vpop.f32.mrf.mxu0
    %315 = vdwg.mxu0
    %vm316 = vcmask 48128
    %v317 = vsel %vm316, %v313, -inf
    %318 = vmax.xlane.f32.xlu0 %v317
    %v319 = vpop.xlane.xlu0 %318
    %v320 = vsub.f32 %v313, %v319
    %v321 = vmul.f32 %v320, 1.442695
    %v322 = vpow.pop %v321
    %v323 = vsel %vm316, %v322, 0.0
    %324 = vadd.xlane.f32.xlu0 %v323
    %v325 = vpop.xlane.xlu0 %324
    %v326 = vrcp.pop %v325
    %v327 = vmul.f32 %v325, %v326
    %v328 = vsub.f32 2.0, %v327
    %v329 = vmul.f32 %v326, %v328
    %v330 = vmul.f32 %v322, %v329
    %331 = vst.msk [vmem:[#allocation7] sm:$0xff] %vm316, %v330
    // Predicated region
    $region38: #{actor_forward.1} parent=1 // pred_check
      _
    $region39: #{actor_forward.1} parent=1 // pred_check_branch
      %333 = sbr.rel (0) target = $region41
    $region40: #{actor_forward.1} parent=1 // pred_region
      %s335 = ssub.s32 128, 128
      %336 = vsyncadd [#allocation4], %s335
      %s338 = sshll.u32 [#allocation7], 4
      %s339 = int_to_ptr.vmem [resolvable:$true] %s338
      %341 = dma.vmem_to_hbm [thread:$0]  %s339, 128, %s7, [#allocation4]
    $region41: #{actor_forward.1} parent=1 // pred_fallthru
      _
    // Predicated region
    $region42: #{actor_forward.1} parent=1 // pred_check
      _
    $region43: #{actor_forward.1} parent=1 // pred_check_branch
      %343 = sbr.rel (0) target = $region45
    $region44: #{actor_forward.1} parent=1 // pred_region
      %344 = dma.done [#allocation4], 128
    $region45: #{actor_forward.1} parent=1 // pred_fallthru
      _
    %345 = vsyncpa [#allocation3], 1
    %346 = vsyncpa [#allocation6], 1
    %347 = vsyncpa [#allocation4], 1

</llo_original>
